<compile_context>
chip_gen: v7x
topology: tpu7x:2x2x1
jax: 0.10.0
libtpu: 0.0.40
codegen_flags: <defaults>
</compile_context>

<pallas_src>
import jax
import jax.numpy as jnp
from jax.experimental import pallas as pl
from jax.experimental.pallas import tpu as pltpu


TB = 128  # batch tile (lane axis)


def actor_kernel(x_ref, w1_ref, b1_ref, w2_ref, b2_ref, w3_ref, b3_ref, a_ref):
    # x_ref: (obs_dim, TB)  -- batch on lanes, features on sublanes.
    xt = x_ref[...]

    # ---- MLP hot path (MXU matmuls + VPU elementwise), f32 accumulation ----
    h = jnp.dot(w1_ref[...], xt, preferred_element_type=jnp.float32) + b1_ref[...]
    h = jnp.maximum(h, 0.0)                                            # ReLU
    h = jnp.dot(w2_ref[...], h, preferred_element_type=jnp.float32) + b2_ref[...]
    h = jnp.maximum(h, 0.0)                                            # ReLU
    logits = jnp.dot(w3_ref[...], h, preferred_element_type=jnp.float32) + b3_ref[...]
    # logits: (act_dim, TB)

    # ---- argmax over the action (sublane) axis, first occurrence ----
    # softmax dropped: monotone, probs never returned (argmax-invariant).
    col_max = jnp.max(logits, axis=0, keepdims=True)                   # (1, TB)
    idx = jax.lax.broadcasted_iota(jnp.int32, logits.shape, 0)         # action ids
    first_max = jnp.min(
        jnp.where(logits == col_max, idx, jnp.int32(2 ** 30)),
        axis=0, keepdims=True,
    )                                                                   # (1, TB)
    a_ref[...] = first_max  # lane-dense int32 row, unmasked store


def make_actor(params):
    """params: w1,w2,w3 as (out,in) float32; b1,b2,b3 as (out,1) float32."""
    w1, b1, w2, b2, w3, b3 = (params[k] for k in ("w1", "b1", "w2", "b2", "w3", "b3"))
    h1, obs_dim = w1.shape
    h2 = w2.shape[0]
    act_dim = w3.shape[0]
    assert act_dim < 2 ** 30, "argmax sentinel assumes act_dim < 2**30"

    def build_call(b_padded):
        n_tiles = b_padded // TB
        return pl.pallas_call(
            actor_kernel,
            out_shape=jax.ShapeDtypeStruct((1, b_padded), jnp.int32),
            grid_spec=pltpu.PrefetchScalarGridSpec(
                num_scalar_prefetch=0,
                grid=(n_tiles,),
                in_specs=[
                    # x^T batch tile: new block per grid step (lane-dense batch).
                    pl.BlockSpec((obs_dim, TB), lambda i: (0, i)),
                    # Weights/biases: constant block index -> stay VMEM-resident.
                    pl.BlockSpec((h1, obs_dim), lambda i: (0, 0)),
                    pl.BlockSpec((h1, 1), lambda i: (0, 0)),
                    pl.BlockSpec((h2, h1), lambda i: (0, 0)),
                    pl.BlockSpec((h2, 1), lambda i: (0, 0)),
                    pl.BlockSpec((act_dim, h2), lambda i: (0, 0)),
                    pl.BlockSpec((act_dim, 1), lambda i: (0, 0)),
                ],
                out_specs=pl.BlockSpec((1, TB), lambda i: (0, i)),
            ),
            compiler_params=pltpu.CompilerParams(
                dimension_semantics=("parallel",),  # v7x: shard batch over both TCs
            ),
        )

    @jax.jit
    def forward(obs):
        # obs: (B, obs_dim) float32 -> (B,) int32 action indices
        b = obs.shape[0]
        pad = (-b) % TB
        obs_p = jnp.pad(obs.astype(jnp.float32), ((0, pad), (0, 0)))
        xt = obs_p.T  # (obs_dim, B_padded): batch on the lane axis
        a = build_call(b + pad)(xt, w1, b1, w2, b2, w3, b3)
        return a[0, :b]

    return forward


def init_params(obs_dim, hidden_sizes, act_dim, key):
    sizes = [obs_dim] + list(hidden_sizes) + [act_dim]
    assert len(sizes) == 4, "this script wires a 2-hidden-layer MLP"
    params = {}
    for n, (fin, fout) in zip(("1", "2", "3"), zip(sizes[:-1], sizes[1:])):
        key, kw, kb = jax.random.split(key, 3)
        scale = 1.0 / jnp.sqrt(jnp.float32(fin))
        params["w" + n] = jax.random.uniform(kw, (fout, fin), jnp.float32, -1.0, 1.0) * scale
        params["b" + n] = jax.random.uniform(kb, (fout, 1), jnp.float32, -1.0, 1.0) * scale
    return params


def reference_forward(params, obs):
    # obs: (B, obs_dim) -> (B,) int32   (full softmax kept, as in the PyTorch module)
    h = jnp.maximum(obs @ params["w1"].T + params["b1"].T, 0.0)
    h = jnp.maximum(h @ params["w2"].T + params["b2"].T, 0.0)
    logits = h @ params["w3"].T + params["b3"].T
    probs = jax.nn.softmax(logits, axis=-1)
    return jnp.argmax(probs, axis=-1).astype(jnp.int32)


if __name__ == "__main__":
    obs_dim, act_dim = 16, 8
    hidden_sizes = (32, 32)
    batch = 256  # 2 batch tiles of 128

    key = jax.random.PRNGKey(0)
    key_params, key_obs = jax.random.split(key)
    params = init_params(obs_dim, hidden_sizes, act_dim, key_params)
    obs = jax.random.normal(key_obs, (batch, obs_dim), jnp.float32)

    actor = make_actor(params)
    a = actor(obs)
    jax.block_until_ready(a)

    a_ref = reference_forward(params, obs)
    assert a.shape == (batch,)
    assert bool(jnp.all(a == a_ref)), "mismatch between kernel and reference actions"

    print("KERNEL_OK")
</pallas_src>

<mosaic_0001>
module attributes {stable_mosaic.version = 11 : i64} {
  func.func @actor_kernel(%arg0: i32, %arg1: memref<16x128xf32, #tpu.memory_space<vmem>>, %arg2: memref<32x16xf32, #tpu.memory_space<vmem>>, %arg3: memref<32x1xf32, #tpu.memory_space<vmem>>, %arg4: memref<32x32xf32, #tpu.memory_space<vmem>>, %arg5: memref<32x1xf32, #tpu.memory_space<vmem>>, %arg6: memref<8x32xf32, #tpu.memory_space<vmem>>, %arg7: memref<8x1xf32, #tpu.memory_space<vmem>>, %arg8: memref<1x128xi32, #tpu.memory_space<vmem>>) attributes {dimension_semantics = [#tpu.dimension_semantics<parallel>], iteration_bounds = array<i64: 2>, scalar_prefetch = 0 : i64, scratch_operands = 0 : i64, tpu.core_type = #tpu.core_type<tc>, window_params = [{transform_indices = @transform_0, window_bounds = array<i64: 16, 128>}, {pipeline_mode = #tpu.pipeline_mode<synchronous>, transform_indices = @transform_1, window_bounds = array<i64: 32, 16>}, {pipeline_mode = #tpu.pipeline_mode<synchronous>, transform_indices = @transform_2, window_bounds = array<i64: 32, 1>}, {pipeline_mode = #tpu.pipeline_mode<synchronous>, transform_indices = @transform_3, window_bounds = array<i64: 32, 32>}, {pipeline_mode = #tpu.pipeline_mode<synchronous>, transform_indices = @transform_4, window_bounds = array<i64: 32, 1>}, {pipeline_mode = #tpu.pipeline_mode<synchronous>, transform_indices = @transform_5, window_bounds = array<i64: 8, 32>}, {pipeline_mode = #tpu.pipeline_mode<synchronous>, transform_indices = @transform_6, window_bounds = array<i64: 8, 1>}, {transform_indices = @transform_7, window_bounds = array<i64: 1, 128>}]} {
    %c0 = arith.constant 0 : index
    %c0_0 = arith.constant 0 : index
    %0 = vector.load %arg1[%c0, %c0_0] : memref<16x128xf32, #tpu.memory_space<vmem>>, vector<16x128xf32>
    %c0_1 = arith.constant 0 : index
    %c0_2 = arith.constant 0 : index
    %1 = vector.load %arg2[%c0_1, %c0_2] : memref<32x16xf32, #tpu.memory_space<vmem>>, vector<32x16xf32>
    %cst = arith.constant dense<0.000000e+00> : vector<32x128xf32>
    %2 = tpu.matmul %1, %0, %cst {dimension_numbers = #tpu.dot_dimension_numbers<[1], [0], [0], [1], [0, 0, 1, 1], [], []>} : vector<32x16xf32>, vector<16x128xf32>, vector<32x128xf32> -> vector<32x128xf32>
    %c0_3 = arith.constant 0 : index
    %c0_4 = arith.constant 0 : index
    %3 = vector.load %arg3[%c0_3, %c0_4] : memref<32x1xf32, #tpu.memory_space<vmem>>, vector<32x1xf32>
    %4 = vector.broadcast %3 : vector<32x1xf32> to vector<32x128xf32>
    %5 = arith.addf %2, %4 : vector<32x128xf32>
    %cst_5 = arith.constant 0.000000e+00 : f32
    %6 = vector.broadcast %cst_5 : f32 to vector<32x128xf32>
    %7 = arith.maximumf %5, %6 : vector<32x128xf32>
    %c0_6 = arith.constant 0 : index
    %c0_7 = arith.constant 0 : index
    %8 = vector.load %arg4[%c0_6, %c0_7] : memref<32x32xf32, #tpu.memory_space<vmem>>, vector<32x32xf32>
    %cst_8 = arith.constant dense<0.000000e+00> : vector<32x128xf32>
    %9 = tpu.matmul %8, %7, %cst_8 {dimension_numbers = #tpu.dot_dimension_numbers<[1], [0], [0], [1], [0, 0, 1, 1], [], []>} : vector<32x32xf32>, vector<32x128xf32>, vector<32x128xf32> -> vector<32x128xf32>
    %c0_9 = arith.constant 0 : index
    %c0_10 = arith.constant 0 : index
    %10 = vector.load %arg5[%c0_9, %c0_10] : memref<32x1xf32, #tpu.memory_space<vmem>>, vector<32x1xf32>
    %11 = vector.broadcast %10 : vector<32x1xf32> to vector<32x128xf32>
    %12 = arith.addf %9, %11 : vector<32x128xf32>
    %cst_11 = arith.constant 0.000000e+00 : f32
    %13 = vector.broadcast %cst_11 : f32 to vector<32x128xf32>
    %14 = arith.maximumf %12, %13 : vector<32x128xf32>
    %c0_12 = arith.constant 0 : index
    %c0_13 = arith.constant 0 : index
    %15 = vector.load %arg6[%c0_12, %c0_13] : memref<8x32xf32, #tpu.memory_space<vmem>>, vector<8x32xf32>
    %cst_14 = arith.constant dense<0.000000e+00> : vector<8x128xf32>
    %16 = tpu.matmul %15, %14, %cst_14 {dimension_numbers = #tpu.dot_dimension_numbers<[1], [0], [0], [1], [0, 0, 1, 1], [], []>} : vector<8x32xf32>, vector<32x128xf32>, vector<8x128xf32> -> vector<8x128xf32>
    %c0_15 = arith.constant 0 : index
    %c0_16 = arith.constant 0 : index
    %17 = vector.load %arg7[%c0_15, %c0_16] : memref<8x1xf32, #tpu.memory_space<vmem>>, vector<8x1xf32>
    %18 = vector.broadcast %17 : vector<8x1xf32> to vector<8x128xf32>
    %19 = arith.addf %16, %18 : vector<8x128xf32>
    %cst_17 = arith.constant dense<0xFF800000> : vector<128xf32>
    %20 = vector.multi_reduction <maximumf>, %19, %cst_17 [0] : vector<8x128xf32> to vector<128xf32>
    %21 = vector.shape_cast %20 : vector<128xf32> to vector<1x128xf32>
    %22 = tpu.iota {dimensions = array<i32: 0>} : vector<8x128xi32>
    %23 = vector.broadcast %21 : vector<1x128xf32> to vector<8x128xf32>
    %24 = arith.cmpf oeq, %19, %23 : vector<8x128xf32>
    %c1073741824_i32 = arith.constant 1073741824 : i32
    %25 = vector.broadcast %c1073741824_i32 : i32 to vector<8x128xi32>
    %26 = arith.select %24, %22, %25 : vector<8x128xi1>, vector<8x128xi32>
    %cst_18 = arith.constant dense<2147483647> : vector<128xi32>
    %27 = vector.multi_reduction <minsi>, %26, %cst_18 [0] : vector<8x128xi32> to vector<128xi32>
    %28 = vector.shape_cast %27 : vector<128xi32> to vector<1x128xi32>
    %c0_19 = arith.constant 0 : index
    %c0_20 = arith.constant 0 : index
    %29 = vector.load %arg8[%c0_19, %c0_20] : memref<1x128xi32, #tpu.memory_space<vmem>>, vector<1x128xi32>
    tpu.vector_store %arg8[%c0_19, %c0_20], %28 {strides = array<i32>} : memref<1x128xi32, #tpu.memory_space<vmem>>, vector<1x128xi32>,
    return
  }
  func.func @transform_0(%arg0: i32) -> (i32, i32) {
    %c0_i32 = arith.constant 0 : i32
    %c0_i32_0 = arith.constant 0 : i32
    return %c0_i32, %arg0 : i32, i32
  }
  func.func @transform_1(%arg0: i32) -> (i32, i32) {
    %c0_i32 = arith.constant 0 : i32
    %c0_i32_0 = arith.constant 0 : i32
    %c0_i32_1 = arith.constant 0 : i32
    return %c0_i32, %c0_i32_0 : i32, i32
  }
  func.func @transform_2(%arg0: i32) -> (i32, i32) {
    %c0_i32 = arith.constant 0 : i32
    %c0_i32_0 = arith.constant 0 : i32
    %c0_i32_1 = arith.constant 0 : i32
    return %c0_i32, %c0_i32_0 : i32, i32
  }
  func.func @transform_3(%arg0: i32) -> (i32, i32) {
    %c0_i32 = arith.constant 0 : i32
    %c0_i32_0 = arith.constant 0 : i32
    %c0_i32_1 = arith.constant 0 : i32
    return %c0_i32, %c0_i32_0 : i32, i32
  }
  func.func @transform_4(%arg0: i32) -> (i32, i32) {
    %c0_i32 = arith.constant 0 : i32
    %c0_i32_0 = arith.constant 0 : i32
    %c0_i32_1 = arith.constant 0 : i32
    return %c0_i32, %c0_i32_0 : i32, i32
  }
  func.func @transform_5(%arg0: i32) -> (i32, i32) {
    %c0_i32 = arith.constant 0 : i32
    %c0_i32_0 = arith.constant 0 : i32
    %c0_i32_1 = arith.constant 0 : i32
    return %c0_i32, %c0_i32_0 : i32, i32
  }
  func.func @transform_6(%arg0: i32) -> (i32, i32) {
    %c0_i32 = arith.constant 0 : i32
    %c0_i32_0 = arith.constant 0 : i32
    %c0_i32_1 = arith.constant 0 : i32
    return %c0_i32, %c0_i32_0 : i32, i32
  }
  func.func @transform_7(%arg0: i32) -> (i32, i32) {
    %c0_i32 = arith.constant 0 : i32
    %c0_i32_0 = arith.constant 0 : i32
    return %c0_i32, %arg0 : i32, i32
  }
}

</mosaic_0001>

<llo_original>
// kernel: forward.1
$region0: #{forward.1}
  #allocation0 [shape = 'u32[]', space=smem, size = 0x4, offset = 0x4, fixed_abs, tag = 'smem constant byte address 0x4 - core index']
  #allocation1 [shape = 'u32[144,128]{1,0:T(1,128)}', space=vmem, size = 0x12000, scoped, tag = 'internal scratch']
  %s0 = inlined_call_operand.hbm [shape: f32[16,256], index: 0, kind: input, shape index: {}]
  %s1 = inlined_call_operand.hbm [shape: f32[32,16], index: 1, kind: input, shape index: {}]
  %s2 = inlined_call_operand.hbm [shape: f32[32,1], index: 2, kind: input, shape index: {}]
  %s3 = inlined_call_operand.hbm [shape: f32[32,32], index: 3, kind: input, shape index: {}]
  %s4 = inlined_call_operand.hbm [shape: f32[32,1], index: 4, kind: input, shape index: {}]
  %s5 = inlined_call_operand.vmem [shape: f32[8,32], index: 5, kind: input, shape index: {}]
  %s6 = inlined_call_operand.vmem [shape: f32[8,1], index: 6, kind: input, shape index: {}]
  %s7 = inlined_call_operand.hbm [shape: s32[1,256], index: 7, kind: output, shape index: {}]
  %s8 = sld [smem:[#allocation0]]
  $region81: #{forward.1} parent=0
    _
  %s10 = ssub.s32 1, %s8
  %s11 = scalar_select 0, %s10, %s8
  $region1: #{forward.1} parent=0
    #allocation2 [shape = 'u8[16384]{0}', space=vmem, size = 0x4000, scoped, tag = 'input window, operand 0']
    #allocation3 [shape = 's32[2]{0}', space=sflag, size = 0x8, scoped, tag = 'scoped memory for forward.1']
    #allocation4 [shape = 's32[2]{0}', space=sflag, size = 0x8, scoped, tag = 'scoped memory for forward.1']
    #allocation5 [shape = 'u8[16384]{0}', space=vmem, size = 0x4000, scoped, tag = 'input window, operand 1, single buffered']
    #allocation6 [shape = 's32[1]{0}', space=sflag, size = 0x4, scoped, tag = 'scoped memory for forward.1']
    #allocation7 [shape = 'u8[16384]{0}', space=vmem, size = 0x4000, scoped, tag = 'input window, operand 2, single buffered']
    #allocation8 [shape = 'u8[16384]{0}', space=vmem, size = 0x4000, scoped, tag = 'input window, operand 3, single buffered']
    #allocation9 [shape = 's32[1]{0}', space=sflag, size = 0x4, scoped, tag = 'scoped memory for forward.1']
    #allocation10 [shape = 'u8[16384]{0}', space=vmem, size = 0x4000, scoped, tag = 'input window, operand 4, single buffered']
    #allocation11 [shape = 'u8[1024]{0}', space=vmem, size = 0x400, scoped, tag = 'output window, operand 0']
    %12 = vsyncpa [#allocation3], 0
    %s13 = scalar_lea.sflag [#allocation3], 1
    %14 = vsyncpa %s13, 0
    %15 = vsyncpa [#allocation6], 0
    %16 = vsyncpa [#allocation9], 0
    %17 = vsyncpa [#allocation4], 0
    %s18 = scalar_lea.sflag [#allocation4], 1
    %19 = vsyncpa %s18, 0
    loop: start=0, step=1, limit=4
    $region2: #{forward.1} parent=1 // loop_pre_header
      _
    $region3: #{forward.1} parent=1 // loop_header
      %s21 = sphi 0, %s25
      %p22 = scmp.ge.s32.totalorder %s21, 4
      %s31 = sphi 0, %s33
      %s34 = sphi 0, %s31
      %s35 = sphi 0, %s34
      %s51 = sphi 0, %s35
      %s55 = sphi 0, %s55
      %s57 = sphi 0, %s55
      %s58 = sphi 0, %s57
      %s72 = sphi 0, %s58
      %s76 = sphi 0, %s76
      %s78 = sphi 0, %s76
      %s79 = sphi 0, %s78
      %s93 = sphi 0, %s79
      %s97 = sphi 0, %s97
      %s99 = sphi 0, %s97
      %s100 = sphi 0, %s99
      %s114 = sphi 0, %s100
      %s118 = sphi 0, %s118
      %s120 = sphi 0, %s118
      %s121 = sphi 0, %s120
      %s135 = sphi 0, %s121
      %s139 = sphi 0, %s139
      %s141 = sphi 0, %s139
      %s142 = sphi 0, %s141
      %s156 = sphi 0, %s142
      %s160 = sphi 0, %s160
      %s162 = sphi 0, %s160
      %s163 = sphi 0, %s162
      %s177 = sphi 0, %s163
      %s183 = sphi 0, %s185
      %s186 = sphi 0, %s183
      %s187 = sphi 0, %s186
      %s203 = sphi 0, %s187
    $region4: #{forward.1} parent=1 // loop_header_branch
      %24 = sbr.rel (%p22) target = $region8
    $region5: #{forward.1} parent=1 // loop_body
      %s26 = ssub.s32 %s21, 1
      %s27 = ssub.s32 %s21, 2
      %s28 = sadd.s32 %s21, 1
      %s29 = ssub.s32 %s21, %s28
      %p30 = scmp.eq.s32.totalorder %s29, 0
      %s32 = sadd.s32 %s31, 1
      %s33 = scalar_select %p30, %s31, %s32
      %p36 = pneg %p30
      %p37 = scmp.eq.s32.totalorder %s21, 1
      %p38 = por %p36, %p37
      %p39 = scmp.ne.s32.totalorder %s31, %s34
      %p40 = scmp.eq.s32.totalorder %s21, 0
      %p41 = por %p39, %p40
      %p42 = scmp.ne.s32.totalorder %s31, %s34
      %p43 = scmp.eq.s32.totalorder %s26, 1
      %p44 = por %p42, %p43
      %p45 = scmp.ne.s32.totalorder %s34, %s35
      %p46 = scmp.eq.s32.totalorder %s26, 0
      %p47 = por %p45, %p46
      %p48 = scmp.ne.s32.totalorder %s34, %s35
      %p49 = scmp.eq.s32.totalorder %s27, 1
      %p50 = por %p48, %p49
      %p52 = scmp.ne.s32.totalorder %s35, %s51
      %p53 = scmp.eq.s32.totalorder %s27, 0
      %p54 = por %p52, %p53
      %s56 = sadd.s32 %s55, 1
      %p59 = scmp.eq.s32.totalorder %s21, 1
      %p60 = scmp.ne.s32.totalorder %s55, %s57
      %p61 = scmp.eq.s32.totalorder %s21, 0
      %p62 = por %p60, %p61
      %p63 = scmp.ne.s32.totalorder %s55, %s57
      %p64 = scmp.eq.s32.totalorder %s26, 1
      %p65 = por %p63, %p64
      %p66 = scmp.ne.s32.totalorder %s57, %s58
      %p67 = scmp.eq.s32.totalorder %s26, 0
      %p68 = por %p66, %p67
      %p69 = scmp.ne.s32.totalorder %s57, %s58
      %p70 = scmp.eq.s32.totalorder %s27, 1
      %p71 = por %p69, %p70
      %p73 = scmp.ne.s32.totalorder %s58, %s72
      %p74 = scmp.eq.s32.totalorder %s27, 0
      %p75 = por %p73, %p74
      %s77 = sadd.s32 %s76, 1
      %p80 = scmp.eq.s32.totalorder %s21, 1
      %p81 = scmp.ne.s32.totalorder %s76, %s78
      %p82 = scmp.eq.s32.totalorder %s21, 0
      %p83 = por %p81, %p82
      %p84 = scmp.ne.s32.totalorder %s76, %s78
      %p85 = scmp.eq.s32.totalorder %s26, 1
      %p86 = por %p84, %p85
      %p87 = scmp.ne.s32.totalorder %s78, %s79
      %p88 = scmp.eq.s32.totalorder %s26, 0
      %p89 = por %p87, %p88
      %p90 = scmp.ne.s32.totalorder %s78, %s79
      %p91 = scmp.eq.s32.totalorder %s27, 1
      %p92 = por %p90, %p91
      %p94 = scmp.ne.s32.totalorder %s79, %s93
      %p95 = scmp.eq.s32.totalorder %s27, 0
      %p96 = por %p94, %p95
      %s98 = sadd.s32 %s97, 1
      %p101 = scmp.eq.s32.totalorder %s21, 1
      %p102 = scmp.ne.s32.totalorder %s97, %s99
      %p103 = scmp.eq.s32.totalorder %s21, 0
      %p104 = por %p102, %p103
      %p105 = scmp.ne.s32.totalorder %s97, %s99
      %p106 = scmp.eq.s32.totalorder %s26, 1
      %p107 = por %p105, %p106
      %p108 = scmp.ne.s32.totalorder %s99, %s100
      %p109 = scmp.eq.s32.totalorder %s26, 0
      %p110 = por %p108, %p109
      %p111 = scmp.ne.s32.totalorder %s99, %s100
      %p112 = scmp.eq.s32.totalorder %s27, 1
      %p113 = por %p111, %p112
      %p115 = scmp.ne.s32.totalorder %s100, %s114
      %p116 = scmp.eq.s32.totalorder %s27, 0
      %p117 = por %p115, %p116
      %s119 = sadd.s32 %s118, 1
      %p122 = scmp.eq.s32.totalorder %s21, 1
      %p123 = scmp.ne.s32.totalorder %s118, %s120
      %p124 = scmp.eq.s32.totalorder %s21, 0
      %p125 = por %p123, %p124
      %p126 = scmp.ne.s32.totalorder %s118, %s120
      %p127 = scmp.eq.s32.totalorder %s26, 1
      %p128 = por %p126, %p127
      %p129 = scmp.ne.s32.totalorder %s120, %s121
      %p130 = scmp.eq.s32.totalorder %s26, 0
      %p131 = por %p129, %p130
      %p132 = scmp.ne.s32.totalorder %s120, %s121
      %p133 = scmp.eq.s32.totalorder %s27, 1
      %p134 = por %p132, %p133
      %p136 = scmp.ne.s32.totalorder %s121, %s135
      %p137 = scmp.eq.s32.totalorder %s27, 0
      %p138 = por %p136, %p137
      %s140 = sadd.s32 %s139, 1
      %p143 = scmp.eq.s32.totalorder %s21, 1
      %p144 = scmp.ne.s32.totalorder %s139, %s141
      %p145 = scmp.eq.s32.totalorder %s21, 0
      %p146 = por %p144, %p145
      %p147 = scmp.ne.s32.totalorder %s139, %s141
      %p148 = scmp.eq.s32.totalorder %s26, 1
      %p149 = por %p147, %p148
      %p150 = scmp.ne.s32.totalorder %s141, %s142
      %p151 = scmp.eq.s32.totalorder %s26, 0
      %p152 = por %p150, %p151
      %p153 = scmp.ne.s32.totalorder %s141, %s142
      %p154 = scmp.eq.s32.totalorder %s27, 1
      %p155 = por %p153, %p154
      %p157 = scmp.ne.s32.totalorder %s142, %s156
      %p158 = scmp.eq.s32.totalorder %s27, 0
      %p159 = por %p157, %p158
      %s161 = sadd.s32 %s160, 1
      %p164 = scmp.eq.s32.totalorder %s21, 1
      %p165 = scmp.ne.s32.totalorder %s160, %s162
      %p166 = scmp.eq.s32.totalorder %s21, 0
      %p167 = por %p165, %p166
      %p168 = scmp.ne.s32.totalorder %s160, %s162
      %p169 = scmp.eq.s32.totalorder %s26, 1
      %p170 = por %p168, %p169
      %p171 = scmp.ne.s32.totalorder %s162, %s163
      %p172 = scmp.eq.s32.totalorder %s26, 0
      %p173 = por %p171, %p172
      %p174 = scmp.ne.s32.totalorder %s162, %s163
      %p175 = scmp.eq.s32.totalorder %s27, 1
      %p176 = por %p174, %p175
      %p178 = scmp.ne.s32.totalorder %s163, %s177
      %p179 = scmp.eq.s32.totalorder %s27, 0
      %p180 = por %p178, %p179
      %s181 = ssub.s32 %s21, %s28
      %p182 = scmp.eq.s32.totalorder %s181, 0
      %s184 = sadd.s32 %s183, 1
      %s185 = scalar_select %p182, %s183, %s184
      %p188 = pneg %p182
      %p189 = scmp.eq.s32.totalorder %s21, 1
      %p190 = por %p188, %p189
      %p191 = scmp.ne.s32.totalorder %s183, %s186
      %p192 = scmp.eq.s32.totalorder %s21, 0
      %p193 = por %p191, %p192
      %p194 = scmp.ne.s32.totalorder %s183, %s186
      %p195 = scmp.eq.s32.totalorder %s26, 1
      %p196 = por %p194, %p195
      %p197 = scmp.ne.s32.totalorder %s186, %s187
      %p198 = scmp.eq.s32.totalorder %s26, 0
      %p199 = por %p197, %p198
      %p200 = scmp.ne.s32.totalorder %s186, %s187
      %p201 = scmp.eq.s32.totalorder %s27, 1
      %p202 = por %p200, %p201
      %p204 = scmp.ne.s32.totalorder %s187, %s203
      %p205 = scmp.eq.s32.totalorder %s27, 0
      %p206 = por %p204, %p205
      %p207 = scmp.le.s32.totalorder 1, %s21
      %p208 = scmp.lt.s32.totalorder %s21, 3
      %p209 = pnand %p207, %p208
      %p210 = pneg %p209
      // Predicated region
      $region9: #{forward.1} parent=5 // pred_check
        _
      $region10: #{forward.1} parent=5 // pred_check_branch
        %212 = sbr.rel (%p209) target = $region12
      $region11: #{forward.1} parent=5 // pred_region
        %s213 = ssub.s32 %s21, 1
        // Predicated region
        $region13: #{forward.1} parent=11 // pred_check
          %p214 = pneg %p68
        $region14: #{forward.1} parent=11 // pred_check_branch
          %216 = sbr.rel (%p214) target = $region16
        $region15: #{forward.1} parent=11 // pred_region
          %s218 = ssub.s32 512, 512
          %219 = vsyncadd [#allocation6], %s218
          %s220 = sshll.u32 [#allocation5], 4
          %s221 = int_to_ptr.vmem [resolvable:$true] %s220
          %226 = dma.hbm_to_vmem [thread:$0]  %s1, 512, %s221, [#allocation6], 128, 128, 8
        $region16: #{forward.1} parent=11 // pred_fallthru
          _
        // Predicated region
        $region17: #{forward.1} parent=11 // pred_check
          %p227 = pneg %p89
        $region18: #{forward.1} parent=11 // pred_check_branch
          %229 = sbr.rel (%p227) target = $region20
        $region19: #{forward.1} parent=11 // pred_region
          %s231 = ssub.s32 512, 512
          %232 = vsyncadd [#allocation6], %s231
          %s233 = sshll.u32 [#allocation7], 4
          %s234 = int_to_ptr.vmem [resolvable:$true] %s233
          %239 = dma.hbm_to_vmem [thread:$0]  %s2, 512, %s234, [#allocation6], 128, 128, 8
        $region20: #{forward.1} parent=11 // pred_fallthru
          _
        // Predicated region
        $region21: #{forward.1} parent=11 // pred_check
          %p240 = pneg %p110
        $region22: #{forward.1} parent=11 // pred_check_branch
          %242 = sbr.rel (%p240) target = $region24
        $region23: #{forward.1} parent=11 // pred_region
          %s244 = ssub.s32 512, 512
          %245 = vsyncadd [#allocation9], %s244
          %s246 = sshll.u32 [#allocation8], 4
          %s247 = int_to_ptr.vmem [resolvable:$true] %s246
          %252 = dma.hbm_to_vmem [thread:$0]  %s3, 512, %s247, [#allocation9], 128, 128, 8
        $region24: #{forward.1} parent=11 // pred_fallthru
          _
        // Predicated region
        $region25: #{forward.1} parent=11 // pred_check
          %p253 = pneg %p131
        $region26: #{forward.1} parent=11 // pred_check_branch
          %255 = sbr.rel (%p253) target = $region28
        $region27: #{forward.1} parent=11 // pred_region
          %s257 = ssub.s32 512, 512
          %258 = vsyncadd [#allocation9], %s257
          %s259 = sshll.u32 [#allocation10], 4
          %s260 = int_to_ptr.vmem [resolvable:$true] %s259
          %265 = dma.hbm_to_vmem [thread:$0]  %s4, 512, %s260, [#allocation9], 128, 128, 8
        $region28: #{forward.1} parent=11 // pred_fallthru
          _
        // Predicated region
        $region29: #{forward.1} parent=11 // pred_check
          %p266 = pneg %p152
        $region30: #{forward.1} parent=11 // pred_check_branch
          %268 = sbr.rel (%p266) target = $region32
        $region31: #{forward.1} parent=11 // pred_region
          _
        $region32: #{forward.1} parent=11 // pred_fallthru
          _
        // Predicated region
        $region33: #{forward.1} parent=11 // pred_check
          %p269 = pneg %p173
        $region34: #{forward.1} parent=11 // pred_check_branch
          %271 = sbr.rel (%p269) target = $region36
        $region35: #{forward.1} parent=11 // pred_region
          _
        $region36: #{forward.1} parent=11 // pred_fallthru
          _
      $region12: #{forward.1} parent=5 // pred_fallthru
        _
      %p272 = scmp.lt.s32.totalorder %s21, 2
      // Predicated region
      $region37: #{forward.1} parent=5 // pred_check
        %p273 = pneg %p272
      $region38: #{forward.1} parent=5 // pred_check_branch
        %275 = sbr.rel (%p273) target = $region40
      $region39: #{forward.1} parent=5 // pred_region
        // Predicated region
        $region41: #{forward.1} parent=39 // pred_check
          %p276 = pneg %p41
        $region42: #{forward.1} parent=39 // pred_check_branch
          %278 = sbr.rel (%p276) target = $region44
        $region43: #{forward.1} parent=39 // pred_region
          %s279 = sand.u32 %s31, 1
          %s280 = scalar_lea.sflag [#allocation3], %s279
          %s281 = sand.u32 %s31, 1
          %s282 = smul.addr %s281, 16
          %s283 = scalar_lea.vmem [#allocation2], %s282
          %s285 = ssub.s32 256, 256
          %286 = vsyncadd %s280, %s285
          %s287 = smul.addr %s21, 128
          %s288 = scalar_lea.hbm %s0, %s287
          %s289 = sshll.u32 %s283, 4
          %s290 = int_to_ptr.vmem [resolvable:$true] %s289
          %295 = dma.hbm_to_vmem [thread:$0]  %s288, 256, %s290, %s280, 256, 128, 8
        $region44: #{forward.1} parent=39 // pred_fallthru
          _
      $region40: #{forward.1} parent=5 // pred_fallthru
        _
      %p296 = scmp.le.s32.totalorder 1, %s21
      %p297 = scmp.lt.s32.totalorder %s21, 3
      %p298 = pnand %p296, %p297
      %p299 = pneg %p298
      // Predicated region
      $region45: #{forward.1} parent=5 // pred_check
        _
      $region46: #{forward.1} parent=5 // pred_check_branch
        %301 = sbr.rel (%p298) target = $region48
      $region47: #{forward.1} parent=5 // pred_region
        %s302 = ssub.s32 %s21, 1
        %s303 = sand.u32 %s34, 1
        %s304 = scalar_lea.sflag [#allocation3], %s303
        %s305 = sand.u32 %s34, 1
        %s306 = smul.addr %s305, 16
        %s307 = scalar_lea.vmem [#allocation2], %s306
        // Predicated region
        $region49: #{forward.1} parent=47 // pred_check
          %p308 = pneg %p47
        $region50: #{forward.1} parent=47 // pred_check_branch
          %310 = sbr.rel (%p308) target = $region52
        $region51: #{forward.1} parent=47 // pred_region
          %311 = dma.done %s304, 256
        $region52: #{forward.1} parent=47 // pred_fallthru
          _
        // Predicated region
        $region53: #{forward.1} parent=47 // pred_check
          %p312 = pneg %p68
        $region54: #{forward.1} parent=47 // pred_check_branch
          %314 = sbr.rel (%p312) target = $region56
        $region55: #{forward.1} parent=47 // pred_region
          %315 = dma.done [#allocation6], 512
        $region56: #{forward.1} parent=47 // pred_fallthru
          _
        // Predicated region
        $region57: #{forward.1} parent=47 // pred_check
          %p316 = pneg %p89
        $region58: #{forward.1} parent=47 // pred_check_branch
          %318 = sbr.rel (%p316) target = $region60
        $region59: #{forward.1} parent=47 // pred_region
          %319 = dma.done [#allocation6], 512
        $region60: #{forward.1} parent=47 // pred_fallthru
          _
        // Predicated region
        $region61: #{forward.1} parent=47 // pred_check
          %p320 = pneg %p110
        $region62: #{forward.1} parent=47 // pred_check_branch
          %322 = sbr.rel (%p320) target = $region64
        $region63: #{forward.1} parent=47 // pred_region
          %323 = dma.done [#allocation9], 512
        $region64: #{forward.1} parent=47 // pred_fallthru
          _
        // Predicated region
        $region65: #{forward.1} parent=47 // pred_check
          %p324 = pneg %p131
        $region66: #{forward.1} parent=47 // pred_check_branch
          %326 = sbr.rel (%p324) target = $region68
        $region67: #{forward.1} parent=47 // pred_region
          %327 = dma.done [#allocation9], 512
        $region68: #{forward.1} parent=47 // pred_fallthru
          _
        %s328 = sand.u32 %s34, 1
        %s329 = scalar_lea.sflag [#allocation3], %s328
        %s330 = sand.u32 %s34, 1
        %s331 = smul.addr %s330, 16
        %s332 = scalar_lea.vmem [#allocation2], %s331
        %p333 = pneg %p47
        %p334 = pneg %p44
        %p335 = pneg %p68
        %p336 = pneg %p65
        %p337 = pneg %p89
        %p338 = pneg %p86
        %p339 = pneg %p110
        %p340 = pneg %p107
        %p341 = pneg %p131
        %p342 = pneg %p128
        %p343 = pneg %p152
        %p344 = pneg %p149
        %p345 = pneg %p173
        %p346 = pneg %p170
        %p347 = pneg %p199
        %p348 = pneg %p196
        %s349 = sand.u32 %s186, 1
        %s350 = scalar_lea.sflag [#allocation4], %s349
        %s351 = sand.u32 %s186, 1
        %s352 = scalar_lea.vmem [#allocation11], %s351
        %v353 = vld [vmem:[%s307] sm:$0xff]
        %v354 = vld [vmem:[%s307 + $0x8] sm:$0xff]
        %v355 = vld [vmem:[#allocation5] sm:$0xff]
        %v356 = vld [vmem:[#allocation5 + $0x8] sm:$0xff]
        %v357 = vld [vmem:[#allocation5 + $0x10] sm:$0xff]
        %v358 = vld [vmem:[#allocation5 + $0x18] sm:$0xff]
        %v359 = vld [vmem:[#allocation7] sm:$0xff]
        %v360 = vld [vmem:[#allocation7 + $0x8] sm:$0xff]
        %v361 = vld [vmem:[#allocation7 + $0x10] sm:$0xff]
        %v362 = vld [vmem:[#allocation7 + $0x18] sm:$0xff]
        %364 = vset.pattern.permute.xlu0 0
        %365 = vperm.xlu0 %364, %v359
        %v366 = vpop.permute.xlu0 %365
        %369 = vset.pattern.permute.xlu0 0
        %370 = vperm.xlu0 %369, %v360
        %v371 = vpop.permute.xlu0 %370
        %374 = vset.pattern.permute.xlu0 0
        %375 = vperm.xlu0 %374, %v361
        %v376 = vpop.permute.xlu0 %375
        %379 = vset.pattern.permute.xlu0 0
        %380 = vperm.xlu0 %379, %v362
        %v381 = vpop.permute.xlu0 %380
        %vm383 = vcmask 130048
        %v385 = vsel %vm383, %v355, 0
        %v388 = vsel %vm383, %v356, 0
        %v391 = vsel %vm383, %v357, 0
        %v394 = vsel %vm383, %v358, 0
        %396 = vmatprep.subr.mxu0 0.0
        %397 = vmatpush1.msra.mxu0 %v353
        %398 = vmatprep.subr.mxu0 0.0
        %399 = vmatpush1.msra.mxu0 %v354
        %400 = vmatprep.subr.mxu0 0.0
        %401 = vmatpush1.msra.mxu0 0.0
        %402 = vmatprep.subr.mxu0 0.0
        %403 = vmatpush1.msra.mxu0 0.0
        %404 = vmatprep.subr.mxu0 0.0
        %405 = vmatpush1.msra.mxu0 0.0
        %406 = vmatprep.subr.mxu0 0.0
        %407 = vmatpush1.msra.mxu0 0.0
        %408 = vmatprep.subr.mxu0 0.0
        %409 = vmatpush1.msra.mxu0 0.0
        %410 = vmatprep.subr.mxu0 0.0
        %411 = vmatpush1.msra.mxu0 0.0
        %412 = vmatprep.subr.mxu0 0.0
        %413 = vmatpush1.msra.mxu0 0.0
        %414 = vmatprep.subr.mxu0 0.0
        %415 = vmatpush1.msra.mxu0 0.0
        %416 = vmatprep.subr.mxu0 0.0
        %417 = vmatpush1.msra.mxu0 0.0
        %418 = vmatprep.subr.mxu0 0.0
        %419 = vmatpush1.msra.mxu0 0.0
        %420 = vmatprep.subr.mxu0 0.0
        %421 = vmatpush1.msra.mxu0 0.0
        %422 = vmatprep.subr.mxu0 0.0
        %423 = vmatpush1.msra.mxu0 0.0
        %424 = vmatprep.subr.mxu0 0.0
        %425 = vmatpush1.msra.mxu0 0.0
        %426 = vmatprep.subr.mxu0 0.0
        %427 = vmatpush1.msra.mxu0 0.0
        %428 = vmatprep.subr.mxu0 0.0
        %429 = vmatpush1.msra.mxu0 0.0
        %430 = vmatprep.subr.mxu0 0.0
        %431 = vmatpush1.msra.mxu0 0.0
        %432 = vmatprep.subr.mxu0 0.0
        %433 = vmatpush1.msra.mxu0 0.0
        %434 = vmatprep.subr.mxu0 0.0
        %435 = vmatpush1.msra.mxu0 0.0
        %436 = vmatprep.subr.mxu0 0.0
        %437 = vmatpush1.msra.mxu0 0.0
        %438 = vmatprep.subr.mxu0 0.0
        %439 = vmatpush1.msra.mxu0 0.0
        %440 = vmatprep.subr.mxu0 0.0
        %441 = vmatpush1.msra.mxu0 0.0
        %442 = vmatprep.subr.mxu0 0.0
        %443 = vmatpush1.msra.mxu0 0.0
        %444 = vmatprep.subr.mxu0 0.0
        %445 = vmatpush1.msra.mxu0 0.0
        %446 = vmatprep.subr.mxu0 0.0
        %447 = vmatpush1.msra.mxu0 0.0
        %448 = vmatprep.subr.mxu0 0.0
        %449 = vmatpush1.msra.mxu0 0.0
        %450 = vmatprep.subr.mxu0 0.0
        %451 = vmatpush1.msra.mxu0 0.0
        %452 = vmatprep.subr.mxu0 0.0
        %453 = vmatpush1.msra.mxu0 0.0
        %454 = vmatprep.subr.mxu0 0.0
        %455 = vmatpush1.msra.mxu0 0.0
        %456 = vmatprep.subr.mxu0 0.0
        %457 = vmatpush1.msra.mxu0 0.0
        %458 = vmatprep.subr.mxu0 0.0
        %459 = vmatpush1.msra.mxu0 0.0
        %460 = vmatprep.mubr.f32.mxu0 0.0
        %461 = vmatmul.mubr.f32.gmra.mrb[0].mxu0 %v385
        %v462 = vpop.f32.mrb[0].mxu0
        %v463 = vadd.f32 %v366, %v462
        %v464 = vpop.f32.mrb[0].mxu0
        %465 = vmatprep.mubr.f32.mxu0 0.0
        %466 = vmatmul.mubr.f32.gmra.mrb[0].mxu0 %v388
        %v467 = vpop.f32.mrb[0].mxu0
        %v468 = vadd.f32 %v371, %v467
        %v469 = vpop.f32.mrb[0].mxu0
        %470 = vmatprep.mubr.f32.mxu0 0.0
        %471 = vmatmul.mubr.f32.gmra.mrb[0].mxu0 %v391
        %v472 = vpop.f32.mrb[0].mxu0
        %v473 = vadd.f32 %v376, %v472
        %v474 = vpop.f32.mrb[0].mxu0
        %475 = vmatprep.mubr.f32.mxu0 0.0
        %476 = vmatmul.mubr.f32.gmra.mrb[0].mxu0 %v394
        %v477 = vpop.f32.mrb[0].mxu0
        %v478 = vadd.f32 %v381, %v477
        %v479 = vpop.f32.mrb[0].mxu0
        %480 = vdwg.mxu0
        %v481 = vmax.f32 %v463, 0.0
        %v482 = vmax.f32 %v468, 0.0
        %v483 = vmax.f32 %v473, 0.0
        %v484 = vmax.f32 %v478, 0.0
        %v485 = vld [vmem:[#allocation8] sm:$0xff]
        %v486 = vld [vmem:[#allocation8 + $0x8] sm:$0xff]
        %v487 = vld [vmem:[#allocation8 + $0x10] sm:$0xff]
        %v488 = vld [vmem:[#allocation8 + $0x18] sm:$0xff]
        %v489 = vld [vmem:[#allocation10] sm:$0xff]
        %v490 = vld [vmem:[#allocation10 + $0x8] sm:$0xff]
        %v491 = vld [vmem:[#allocation10 + $0x10] sm:$0xff]
        %v492 = vld [vmem:[#allocation10 + $0x18] sm:$0xff]
        %494 = vset.pattern.permute.xlu0 0
        %495 = vperm.xlu0 %494, %v489
        %v496 = vpop.permute.xlu0 %495
        %499 = vset.pattern.permute.xlu0 0
        %500 = vperm.xlu0 %499, %v490
        %v501 = vpop.permute.xlu0 %500
        %504 = vset.pattern.permute.xlu0 0
        %505 = vperm.xlu0 %504, %v491
        %v506 = vpop.permute.xlu0 %505
        %509 = vset.pattern.permute.xlu0 0
        %510 = vperm.xlu0 %509, %v492
        %v511 = vpop.permute.xlu0 %510
        %vm513 = vcmask 261120
        %v515 = vsel %vm513, %v485, 0
        %v518 = vsel %vm513, %v486, 0
        %v521 = vsel %vm513, %v487, 0
        %v524 = vsel %vm513, %v488, 0
        %526 = vmatprep.subr.mxu0 0.0
        %527 = vmatpush1.msra.mxu0 %v481
        %528 = vmatprep.subr.mxu0 0.0
        %529 = vmatpush1.msra.mxu0 %v482
        %530 = vmatprep.subr.mxu0 0.0
        %531 = vmatpush1.msra.mxu0 %v483
        %532 = vmatprep.subr.mxu0 0.0
        %533 = vmatpush1.msra.mxu0 %v484
        %534 = vmatprep.subr.mxu0 0.0
        %535 = vmatpush1.msra.mxu0 0.0
        %536 = vmatprep.subr.mxu0 0.0
        %537 = vmatpush1.msra.mxu0 0.0
        %538 = vmatprep.subr.mxu0 0.0
        %539 = vmatpush1.msra.mxu0 0.0
        %540 = vmatprep.subr.mxu0 0.0
        %541 = vmatpush1.msra.mxu0 0.0
        %542 = vmatprep.subr.mxu0 0.0
        %543 = vmatpush1.msra.mxu0 0.0
        %544 = vmatprep.subr.mxu0 0.0
        %545 = vmatpush1.msra.mxu0 0.0
        %546 = vmatprep.subr.mxu0 0.0
        %547 = vmatpush1.msra.mxu0 0.0
        %548 = vmatprep.subr.mxu0 0.0
        %549 = vmatpush1.msra.mxu0 0.0
        %550 = vmatprep.subr.mxu0 0.0
        %551 = vmatpush1.msra.mxu0 0.0
        %552 = vmatprep.subr.mxu0 0.0
        %553 = vmatpush1.msra.mxu0 0.0
        %554 = vmatprep.subr.mxu0 0.0
        %555 = vmatpush1.msra.mxu0 0.0
        %556 = vmatprep.subr.mxu0 0.0
        %557 = vmatpush1.msra.mxu0 0.0
        %558 = vmatprep.subr.mxu0 0.0
        %559 = vmatpush1.msra.mxu0 0.0
        %560 = vmatprep.subr.mxu0 0.0
        %561 = vmatpush1.msra.mxu0 0.0
        %562 = vmatprep.subr.mxu0 0.0
        %563 = vmatpush1.msra.mxu0 0.0
        %564 = vmatprep.subr.mxu0 0.0
        %565 = vmatpush1.msra.mxu0 0.0
        %566 = vmatprep.subr.mxu0 0.0
        %567 = vmatpush1.msra.mxu0 0.0
        %568 = vmatprep.subr.mxu0 0.0
        %569 = vmatpush1.msra.mxu0 0.0
        %570 = vmatprep.subr.mxu0 0.0
        %571 = vmatpush1.msra.mxu0 0.0
        %572 = vmatprep.subr.mxu0 0.0
        %573 = vmatpush1.msra.mxu0 0.0
        %574 = vmatprep.subr.mxu0 0.0
        %575 = vmatpush1.msra.mxu0 0.0
        %576 = vmatprep.subr.mxu0 0.0
        %577 = vmatpush1.msra.mxu0 0.0
        %578 = vmatprep.subr.mxu0 0.0
        %579 = vmatpush1.msra.mxu0 0.0
        %580 = vmatprep.subr.mxu0 0.0
        %581 = vmatpush1.msra.mxu0 0.0
        %582 = vmatprep.subr.mxu0 0.0
        %583 = vmatpush1.msra.mxu0 0.0
        %584 = vmatprep.subr.mxu0 0.0
        %585 = vmatpush1.msra.mxu0 0.0
        %586 = vmatprep.subr.mxu0 0.0
        %587 = vmatpush1.msra.mxu0 0.0
        %588 = vmatprep.subr.mxu0 0.0
        %589 = vmatpush1.msra.mxu0 0.0
        %590 = vmatprep.mubr.f32.mxu0 0.0
        %591 = vmatmul.mubr.f32.gmra.mrb[0].mxu0 %v515
        %v592 = vpop.f32.mrb[0].mxu0
        %v593 = vadd.f32 %v496, %v592
        %v594 = vpop.f32.mrb[0].mxu0
        %595 = vmatprep.mubr.f32.mxu0 0.0
        %596 = vmatmul.mubr.f32.gmra.mrb[0].mxu0 %v518
        %v597 = vpop.f32.mrb[0].mxu0
        %v598 = vadd.f32 %v501, %v597
        %v599 = vpop.f32.mrb[0].mxu0
        %600 = vmatprep.mubr.f32.mxu0 0.0
        %601 = vmatmul.mubr.f32.gmra.mrb[0].mxu0 %v521
        %v602 = vpop.f32.mrb[0].mxu0
        %v603 = vadd.f32 %v506, %v602
        %v604 = vpop.f32.mrb[0].mxu0
        %605 = vmatprep.mubr.f32.mxu0 0.0
        %606 = vmatmul.mubr.f32.gmra.mrb[0].mxu0 %v524
        %v607 = vpop.f32.mrb[0].mxu0
        %v608 = vadd.f32 %v511, %v607
        %v609 = vpop.f32.mrb[0].mxu0
        %610 = vdwg.mxu0
        %v611 = vmax.f32 %v593, 0.0
        %v612 = vmax.f32 %v598, 0.0
        %v613 = vmax.f32 %v603, 0.0
        %v614 = vmax.f32 %v608, 0.0
        %v615 = vld [vmem:[%s5] sm:$0xff]
        %v616 = vld [vmem:[%s6] sm:$0xff]
        %618 = vset.pattern.permute.xlu0 0
        %619 = vperm.xlu0 %618, %v616
        %v620 = vpop.permute.xlu0 %619
        %v623 = vsel %vm513, %v615, 0
        %625 = vmatprep.subr.mxu0 0.0
        %626 = vmatpush1.msra.mxu0 %v611
        %627 = vmatprep.subr.mxu0 0.0
        %628 = vmatpush1.msra.mxu0 %v612
        %629 = vmatprep.subr.mxu0 0.0
        %630 = vmatpush1.msra.mxu0 %v613
        %631 = vmatprep.subr.mxu0 0.0
        %632 = vmatpush1.msra.mxu0 %v614
        %633 = vmatprep.subr.mxu0 0.0
        %634 = vmatpush1.msra.mxu0 0.0
        %635 = vmatprep.subr.mxu0 0.0
        %636 = vmatpush1.msra.mxu0 0.0
        %637 = vmatprep.subr.mxu0 0.0
        %638 = vmatpush1.msra.mxu0 0.0
        %639 = vmatprep.subr.mxu0 0.0
        %640 = vmatpush1.msra.mxu0 0.0
        %641 = vmatprep.subr.mxu0 0.0
        %642 = vmatpush1.msra.mxu0 0.0
        %643 = vmatprep.subr.mxu0 0.0
        %644 = vmatpush1.msra.mxu0 0.0
        %645 = vmatprep.subr.mxu0 0.0
        %646 = vmatpush1.msra.mxu0 0.0
        %647 = vmatprep.subr.mxu0 0.0
        %648 = vmatpush1.msra.mxu0 0.0
        %649 = vmatprep.subr.mxu0 0.0
        %650 = vmatpush1.msra.mxu0 0.0
        %651 = vmatprep.subr.mxu0 0.0
        %652 = vmatpush1.msra.mxu0 0.0
        %653 = vmatprep.subr.mxu0 0.0
        %654 = vmatpush1.msra.mxu0 0.0
        %655 = vmatprep.subr.mxu0 0.0
        %656 = vmatpush1.msra.mxu0 0.0
        %657 = vmatprep.subr.mxu0 0.0
        %658 = vmatpush1.msra.mxu0 0.0
        %659 = vmatprep.subr.mxu0 0.0
        %660 = vmatpush1.msra.mxu0 0.0
        %661 = vmatprep.subr.mxu0 0.0
        %662 = vmatpush1.msra.mxu0 0.0
        %663 = vmatprep.subr.mxu0 0.0
        %664 = vmatpush1.msra.mxu0 0.0
        %665 = vmatprep.subr.mxu0 0.0
        %666 = vmatpush1.msra.mxu0 0.0
        %667 = vmatprep.subr.mxu0 0.0
        %668 = vmatpush1.msra.mxu0 0.0
        %669 = vmatprep.subr.mxu0 0.0
        %670 = vmatpush1.msra.mxu0 0.0
        %671 = vmatprep.subr.mxu0 0.0
        %672 = vmatpush1.msra.mxu0 0.0
        %673 = vmatprep.subr.mxu0 0.0
        %674 = vmatpush1.msra.mxu0 0.0
        %675 = vmatprep.subr.mxu0 0.0
        %676 = vmatpush1.msra.mxu0 0.0
        %677 = vmatprep.subr.mxu0 0.0
        %678 = vmatpush1.msra.mxu0 0.0
        %679 = vmatprep.subr.mxu0 0.0
        %680 = vmatpush1.msra.mxu0 0.0
        %681 = vmatprep.subr.mxu0 0.0
        %682 = vmatpush1.msra.mxu0 0.0
        %683 = vmatprep.subr.mxu0 0.0
        %684 = vmatpush1.msra.mxu0 0.0
        %685 = vmatprep.subr.mxu0 0.0
        %686 = vmatpush1.msra.mxu0 0.0
        %687 = vmatprep.subr.mxu0 0.0
        %688 = vmatpush1.msra.mxu0 0.0
        %689 = vmatprep.mubr.f32.mxu0 0.0
        %690 = vmatmul.mubr.f32.gmra.mrb[0].mxu0 %v623
        %v691 = vpop.f32.mrb[0].mxu0
        %v692 = vadd.f32 %v620, %v691
        %v693 = vpop.f32.mrb[0].mxu0
        %694 = vdwg.mxu0
        %v695 = vrot.slane %v692, 4
        %v696 = vmax.f32 %v692, %v695
        %v697 = vrot.slane %v696, 2
        %v698 = vmax.f32 %v696, %v697
        %v699 = vrot.slane %v698, 1
        %v700 = vmax.f32 %v698, %v699
        %v701 = vlaneseq
        %v702 = vshrl.u32 %v701, 7
        %vm703 = vcmp.eq.f32.partialorder %v692, %v700
        %v704 = vsel %vm703, %v702, 1073741824
        %v705 = vrot.slane %v704, 4
        %vm706 = vcmp.lt.s32.totalorder %v704, %v705
        %v707 = vsel %vm706, %v704, %v705
        %v708 = vrot.slane %v707, 2
        %vm709 = vcmp.lt.s32.totalorder %v707, %v708
        %v710 = vsel %vm709, %v707, %v708
        %v711 = vrot.slane %v710, 1
        %vm712 = vcmp.lt.s32.totalorder %v710, %v711
        %v713 = vsel %vm712, %v710, %v711
        %714 = vst [vmem:[%s352] sm:$0x1] %v713
        %s715 = sand.u32 %s186, 1
        %s716 = scalar_lea.sflag [#allocation4], %s715
        %s717 = sand.u32 %s186, 1
        %s718 = scalar_lea.vmem [#allocation11], %s717
        // Predicated region
        $region69: #{forward.1} parent=47 // pred_check
          %p719 = pneg %p196
        $region70: #{forward.1} parent=47 // pred_check_branch
          %721 = sbr.rel (%p719) target = $region72
        $region71: #{forward.1} parent=47 // pred_region
          %s723 = ssub.s32 16, 16
          %724 = vsyncadd %s716, %s723
          %s725 = smul.addr %s26, 16
          %s726 = scalar_lea.hbm %s7, %s725
          %s728 = sshll.u32 %s718, 4
          %s729 = int_to_ptr.vmem [resolvable:$true] %s728
          %731 = dma.vmem_to_hbm [thread:$0]  %s729, 16, %s726, %s716
        $region72: #{forward.1} parent=47 // pred_fallthru
          _
      $region48: #{forward.1} parent=5 // pred_fallthru
        _
      %p732 = scmp.le.s32.totalorder 2, %s21
      // Predicated region
      $region73: #{forward.1} parent=5 // pred_check
        %p733 = pneg %p732
      $region74: #{forward.1} parent=5 // pred_check_branch
        %735 = sbr.rel (%p733) target = $region76
      $region75: #{forward.1} parent=5 // pred_region
        %s736 = ssub.s32 %s21, 2
        // Predicated region
        $region77: #{forward.1} parent=75 // pred_check
          %p737 = pneg %p202
        $region78: #{forward.1} parent=75 // pred_check_branch
          %739 = sbr.rel (%p737) target = $region80
        $region79: #{forward.1} parent=75 // pred_region
          %s740 = sand.u32 %s187, 1
          %s741 = scalar_lea.sflag [#allocation4], %s740
          %s742 = sand.u32 %s187, 1
          %s743 = scalar_lea.vmem [#allocation11], %s742
          %744 = dma.done %s741, 16
        $region80: #{forward.1} parent=75 // pred_fallthru
          _
      $region76: #{forward.1} parent=5 // pred_fallthru
        _
    $region6: #{forward.1} parent=1 // loop_footer
      %s25 = sadd.s32 1, %s21
    $region7: #{forward.1} parent=1 // loop_footer_branch
      %20 = sbr.rel target = $region3
    $region8: #{forward.1} parent=1 // loop_exit
      _
    %745 = vsyncpa [#allocation3], 1
    %s746 = scalar_lea.sflag [#allocation3], 1
    %747 = vsyncpa %s746, 1
    %748 = vsyncpa [#allocation6], 1
    %749 = vsyncpa [#allocation9], 1
    %750 = vsyncpa [#allocation4], 1
    %s751 = scalar_lea.sflag [#allocation4], 1
    %752 = vsyncpa %s751, 1

</llo_original>
